<compile_context>
chip_gen: v7x
topology: tpu7x:2x2x1
jax: 0.10.0
libtpu: 0.0.40
codegen_flags: <defaults>
</compile_context>

<pallas_src>
import functools

import jax
import jax.numpy as jnp
from jax import lax
from jax.experimental import pallas as pl
from jax.experimental.pallas import tpu as pltpu


HIDDEN = 256
_EPS = 1e-5
_SLOPE = 0.2
_LANE = 128


def _round_up(x, m):
    return (x + m - 1) // m * m


def _physical_vmem_bytes():
    try:
        info = pltpu.get_tpu_info()
        return int(getattr(info, "vmem_capacity_bytes", 64 * 1024 * 1024))
    except Exception:
        return 64 * 1024 * 1024   # conservative (v7x per-TC VMEM)


# --------------------------------------------------------------------------
# Fused (grid-less) kernel: whole batch resident in VMEM. Best for small B.
# --------------------------------------------------------------------------
def _prediction_kernel_fused(x_ref,
                             w1_ref, g1_ref, be1_ref,
                             w2_ref, g2_ref, be2_ref,
                             w3_ref, b3_ref,
                             o_ref):
    inv_b = jnp.float32(1.0 / x_ref.shape[0])

    def bn_leakyrelu(h, g_ref, be_ref):
        # One-pass batch stats, BN folded into per-feature scale/shift (f32).
        s = jnp.sum(h, axis=0, keepdims=True)
        s2 = jnp.sum(h * h, axis=0, keepdims=True)
        mean = s * inv_b
        var = jnp.maximum(s2 * inv_b - mean * mean, 0.0)   # biased var, clamped
        scale = g_ref[...].astype(jnp.float32) * lax.rsqrt(var + _EPS)
        shift = be_ref[...].astype(jnp.float32) - mean * scale
        h = h * scale + shift
        return jnp.maximum(h, _SLOPE * h)                  # LeakyReLU(0.2)

    # fc_1 (bias folded out: cancels exactly under training-mode BN)
    x = x_ref[...].astype(w1_ref.dtype)
    h = jnp.dot(x, w1_ref[...], preferred_element_type=jnp.float32)
    h = bn_leakyrelu(h, g1_ref, be1_ref)

    # fc_2 (bias folded out)
    h = jnp.dot(h.astype(w2_ref.dtype), w2_ref[...],
                preferred_element_type=jnp.float32)
    h = bn_leakyrelu(h, g2_ref, be2_ref)

    # fc_3 (lane-dense: out features padded to a multiple of 128 in wrapper)
    out = jnp.dot(h.astype(w3_ref.dtype), w3_ref[...],
                  preferred_element_type=jnp.float32)
    out = out + b3_ref[...].astype(jnp.float32)
    o_ref[...] = out.astype(o_ref.dtype)


# --------------------------------------------------------------------------
# B-tiled kernel: grid = (3 passes, num_tiles). Two-pass BatchNorm with
# per-feature sum/sumsq accumulated in VMEM scratch; activations persist in a
# VMEM scratch between passes.
#   pass 0: h1 = x @ W1,            accumulate layer-1 stats
#   pass 1: BN1+LReLU, h2 = a @ W2, accumulate layer-2 stats
#   pass 2: BN2+LReLU, out = a @ W3 + b3
# --------------------------------------------------------------------------
def _prediction_kernel_tiled(x_ref,
                             w1_ref, g1_ref, be1_ref,
                             w2_ref, g2_ref, be2_ref,
                             w3_ref, b3_ref,
                             o_ref,
                             h_ref, s1_ref, q1_ref, s2_ref, q2_ref,
                             *, batch, tile_m):
    p = pl.program_id(0)                       # pass
    t = pl.program_id(1)                       # batch tile
    inv_b = jnp.float32(1.0 / batch)
    padded = (h_ref.shape[0] != batch)         # static
    row0 = pl.multiple_of(t * tile_m, tile_m)

    def row_mask():
        rows = t * tile_m + lax.broadcasted_iota(jnp.int32, (tile_m, 1), 0)
        return (rows < batch).astype(jnp.float32)

    def accum_stats(h, s_ref, q_ref):
        if padded:
            m = row_mask()
            hm = h * m
            s_ref[...] += jnp.sum(hm, axis=0, keepdims=True)
            q_ref[...] += jnp.sum(hm * h, axis=0, keepdims=True)
        else:
            s_ref[...] += jnp.sum(h, axis=0, keepdims=True)
            q_ref[...] += jnp.sum(h * h, axis=0, keepdims=True)

    def scale_shift(s_ref, q_ref, g_ref, be_ref):
        mean = s_ref[...] * inv_b
        var = jnp.maximum(q_ref[...] * inv_b - mean * mean, 0.0)
        scale = g_ref[...].astype(jnp.float32) * lax.rsqrt(var + _EPS)
        shift = be_ref[...].astype(jnp.float32) - mean * scale
        return scale, shift

    @pl.when(jnp.logical_and(p == 0, t == 0))
    def _():
        s1_ref[...] = jnp.zeros_like(s1_ref)
        q1_ref[...] = jnp.zeros_like(q1_ref)
        s2_ref[...] = jnp.zeros_like(s2_ref)
        q2_ref[...] = jnp.zeros_like(q2_ref)

    @pl.when(p == 0)
    def _():
        h1 = jnp.dot(x_ref[...].astype(w1_ref.dtype), w1_ref[...],
                     preferred_element_type=jnp.float32)
        accum_stats(h1, s1_ref, q1_ref)
        h_ref[pl.ds(row0, tile_m), :] = h1

    @pl.when(p == 1)
    def _():
        scale, shift = scale_shift(s1_ref, q1_ref, g1_ref, be1_ref)
        h1 = h_ref[pl.ds(row0, tile_m), :]
        a = h1 * scale + shift
        a = jnp.maximum(a, _SLOPE * a)
        h2 = jnp.dot(a.astype(w2_ref.dtype), w2_ref[...],
                     preferred_element_type=jnp.float32)
        accum_stats(h2, s2_ref, q2_ref)
        h_ref[pl.ds(row0, tile_m), :] = h2

    @pl.when(p == 2)
    def _():
        scale, shift = scale_shift(s2_ref, q2_ref, g2_ref, be2_ref)
        h2 = h_ref[pl.ds(row0, tile_m), :]
        a = h2 * scale + shift
        a = jnp.maximum(a, _SLOPE * a)
        out = jnp.dot(a.astype(w3_ref.dtype), w3_ref[...],
                      preferred_element_type=jnp.float32)
        out = out + b3_ref[...].astype(jnp.float32)
        o_ref[...] = out.astype(o_ref.dtype)


# --------------------------------------------------------------------------
# Wrappers
# --------------------------------------------------------------------------
def _fused_call(z, w_args, n_out, vmem_limit, cost):
    B = z.shape[0]
    vmem = pl.BlockSpec(memory_space=pltpu.MemorySpace.VMEM)
    return pl.pallas_call(
        _prediction_kernel_fused,
        out_shape=jax.ShapeDtypeStruct((B, n_out), z.dtype),
        in_specs=[vmem] * (1 + len(w_args)),
        out_specs=vmem,
        cost_estimate=cost,
        compiler_params=pltpu.CompilerParams(vmem_limit_bytes=vmem_limit),
    )(z, *w_args)


def _tiled_call(z, w_args, n_out, tile_m, vmem_limit, cost):
    B, z_dim = z.shape
    nt = pl.cdiv(B, tile_m)
    b_pad = nt * tile_m
    zp = jnp.pad(z, ((0, b_pad - B), (0, 0))) if b_pad != B else z

    kernel = functools.partial(_prediction_kernel_tiled, batch=B, tile_m=tile_m)
    const = lambda p, t: (0, 0)
    in_specs = [pl.BlockSpec((tile_m, z_dim),
                             lambda p, t: (jnp.where(p == 0, t, 0), 0))]
    in_specs += [pl.BlockSpec(a.shape, const) for a in w_args]   # DMA'd once
    out_spec = pl.BlockSpec((tile_m, n_out),
                            lambda p, t: (jnp.where(p == 2, t, 0), 0))

    out = pl.pallas_call(
        kernel,
        out_shape=jax.ShapeDtypeStruct((b_pad, n_out), z.dtype),
        grid_spec=pltpu.PrefetchScalarGridSpec(
            num_scalar_prefetch=0,
            grid=(3, nt),
            in_specs=in_specs,
            out_specs=out_spec,
            scratch_shapes=[pltpu.VMEM((b_pad, HIDDEN), jnp.float32)]
                         + [pltpu.VMEM((1, HIDDEN), jnp.float32)] * 4),
        cost_estimate=cost,
        compiler_params=pltpu.CompilerParams(
            dimension_semantics=("arbitrary", "arbitrary"),
            vmem_limit_bytes=vmem_limit),
    )(zp, *w_args)
    return out[:B] if b_pad != B else out


def prediction_forward(z, params, *, force_tiled=False, tile_m=256):
    """z: (B, z_dim). params: dict from init_params (b1/b2 are unused: they
    cancel under training-mode BatchNorm and are folded out of the kernels)."""
    B, z_dim = z.shape

    # Lane-dense fc_3 / output: pad to a multiple of 128 features, slice after.
    n_out = _round_up(z_dim, _LANE)
    w3, b3 = params["w3"], params["b3"]
    if n_out != z_dim:
        w3 = jnp.pad(w3, ((0, 0), (0, n_out - z_dim)))
        b3 = jnp.pad(b3, ((0, 0), (0, n_out - z_dim)))
    w_args = (params["w1"], params["g1"], params["be1"],
              params["w2"], params["g2"], params["be2"], w3, b3)

    # Advisory cost estimate so XLA can schedule around this custom call.
    flops = 2 * B * (z_dim * HIDDEN + HIDDEN * HIDDEN + HIDDEN * n_out)
    param_bytes = sum(int(a.size) * a.dtype.itemsize for a in w_args)
    io_bytes = B * (z_dim + n_out) * z.dtype.itemsize
    cost = pl.CostEstimate(flops=flops, transcendentals=2 * HIDDEN,
                           bytes_accessed=param_bytes + io_bytes)

    # VMEM budget clamped to the physical capacity of this generation
    # (64 MiB/TC on v7x, 128 MiB on v5e/v6e) with ~15% headroom.
    cap = int(0.85 * _physical_vmem_bytes())
    fused_need = int(1.3 * (param_bytes + 5 * B * HIDDEN * 4 + 2 * io_bytes))

    if force_tiled or fused_need > cap:
        tile_m = _round_up(max(8, min(tile_m, _round_up(B, 8))), 8)
        scratch_bytes = _round_up(B, tile_m) * HIDDEN * 4 + 4 * HIDDEN * 4
        tile_io = 2 * tile_m * (z_dim + n_out) * z.dtype.itemsize
        vmem_limit = min(cap, max(32 * 1024 * 1024,
                                  int(1.4 * (scratch_bytes + 2 * param_bytes
                                             + 2 * tile_io))))
        out = _tiled_call(z, w_args, n_out, tile_m, vmem_limit, cost)
    else:
        vmem_limit = min(cap, max(32 * 1024 * 1024, fused_need))
        out = _fused_call(z, w_args, n_out, vmem_limit, cost)

    return out[:, :z_dim] if n_out != z_dim else out


# --------------------------------------------------------------------------
# Parameters & reference
# --------------------------------------------------------------------------
def init_params(z_dim, key, weight_dtype=jnp.bfloat16):
    """Deterministic synthetic parameters (shapes match nn.Module __init__).
    Weights stored as (in, out) = transpose of PyTorch's (out, in). bf16
    weights by default (MXU-rate dots); BN/bias math stays f32 in the kernel."""
    ks = jax.random.split(key, 6)

    def linear(kw, kb, fan_in, fan_out):
        # PyTorch Linear init: U(-1/sqrt(fan_in), 1/sqrt(fan_in))
        bound = 1.0 / jnp.sqrt(fan_in)
        w = jax.random.uniform(kw, (fan_in, fan_out), jnp.float32, -bound, bound)
        b = jax.random.uniform(kb, (1, fan_out), jnp.float32, -bound, bound)
        return w.astype(weight_dtype), b.astype(jnp.float32)

    w1, b1 = linear(ks[0], ks[1], z_dim, HIDDEN)
    w2, b2 = linear(ks[2], ks[3], HIDDEN, HIDDEN)
    w3, b3 = linear(ks[4], ks[5], HIDDEN, z_dim)
    ones = jnp.ones((1, HIDDEN), jnp.float32)
    zeros = jnp.zeros((1, HIDDEN), jnp.float32)
    return {
        "w1": w1, "b1": b1, "g1": ones, "be1": zeros,
        "w2": w2, "b2": b2, "g2": ones, "be2": zeros,
        "w3": w3, "b3": b3,
    }


def _reference(z, p):
    """Pure-JAX reference matching PyTorch semantics exactly (keeps the fc_1 /
    fc_2 biases, which the kernels fold out — they cancel in training-mode BN)."""
    def bn(h, g, be):
        mean = h.mean(0, keepdims=True)
        var = h.var(0, keepdims=True)                     # biased (ddof=0)
        h = (h - mean) / jnp.sqrt(var + _EPS) * g + be
        return jnp.where(h >= 0, h, _SLOPE * h)

    w1 = p["w1"].astype(jnp.float32)
    w2 = p["w2"].astype(jnp.float32)
    w3 = p["w3"].astype(jnp.float32)
    h = bn(z @ w1 + p["b1"], p["g1"], p["be1"])
    h = bn(h @ w2 + p["b2"], p["g2"], p["be2"])
    return h @ w3 + p["b3"]


if __name__ == "__main__":
    z_dim = 32
    batch = 8
    key = jax.random.PRNGKey(0)
    k_in, k_par, k_in2 = jax.random.split(key, 3)

    # 1) f32 weights, fused path: exact-semantics check (tight tolerance).
    z = jax.random.normal(k_in, (batch, z_dim), jnp.float32)
    params_f32 = init_params(z_dim, k_par, weight_dtype=jnp.float32)
    out = jax.block_until_ready(prediction_forward(z, params_f32))
    ref = _reference(z, params_f32)
    assert out.shape == (batch, z_dim)
    assert jnp.allclose(out, ref, atol=1e-4, rtol=1e-4), \
        float(jnp.max(jnp.abs(out - ref)))

    # 2) default bf16 weights (MXU-rate dots): kernel casts activations to bf16
    #    at the dot inputs only, so compare loosely against the f32-math ref
    #    built from the same (bf16-quantized) weights.
    params_bf16 = init_params(z_dim, k_par)
    out_bf = jax.block_until_ready(prediction_forward(z, params_bf16))
    ref_bf = _reference(z, params_bf16)
    assert out_bf.shape == (batch, z_dim)
    assert jnp.allclose(out_bf, ref_bf, atol=1e-1, rtol=1e-1), \
        float(jnp.max(jnp.abs(out_bf - ref_bf)))

    # 3) B-tiled two-pass-BN path; B=200 is not a multiple of the 128 tile,
    #    exercising the zero-padding + stat-masking logic.
    batch_t = 200
    z_t = jax.random.normal(k_in2, (batch_t, z_dim), jnp.float32)
    out_t = jax.block_until_ready(
        prediction_forward(z_t, params_f32, force_tiled=True, tile_m=128))
    ref_t = _reference(z_t, params_f32)
    assert out_t.shape == (batch_t, z_dim)
    assert jnp.allclose(out_t, ref_t, atol=1e-3, rtol=1e-3), \
        float(jnp.max(jnp.abs(out_t - ref_t)))

    print("KERNEL_OK")
</pallas_src>

<mosaic_0001>
module attributes {stable_mosaic.version = 11 : i64} {
  func.func @_prediction_kernel_fused(%arg0: memref<8x32xf32, #tpu.memory_space<vmem>>, %arg1: memref<32x256xf32, #tpu.memory_space<vmem>>, %arg2: memref<1x256xf32, #tpu.memory_space<vmem>>, %arg3: memref<1x256xf32, #tpu.memory_space<vmem>>, %arg4: memref<256x256xf32, #tpu.memory_space<vmem>>, %arg5: memref<1x256xf32, #tpu.memory_space<vmem>>, %arg6: memref<1x256xf32, #tpu.memory_space<vmem>>, %arg7: memref<256x128xf32, #tpu.memory_space<vmem>>, %arg8: memref<1x128xf32, #tpu.memory_space<vmem>>, %arg9: memref<8x128xf32, #tpu.memory_space<vmem>>) attributes {dimension_semantics = [], scalar_prefetch = 0 : i64, scratch_operands = 0 : i64, tpu.core_type = #tpu.core_type<tc>} {
    %c0 = arith.constant 0 : index
    %c0_0 = arith.constant 0 : index
    %0 = vector.load %arg0[%c0, %c0_0] : memref<8x32xf32, #tpu.memory_space<vmem>>, vector<8x32xf32>
    %c0_1 = arith.constant 0 : index
    %c0_2 = arith.constant 0 : index
    %1 = vector.load %arg1[%c0_1, %c0_2] : memref<32x256xf32, #tpu.memory_space<vmem>>, vector<32x256xf32>
    %cst = arith.constant dense<0.000000e+00> : vector<8x256xf32>
    %2 = tpu.matmul %0, %1, %cst {dimension_numbers = #tpu.dot_dimension_numbers<[1], [0], [0], [1], [0, 0, 1, 1], [], []>} : vector<8x32xf32>, vector<32x256xf32>, vector<8x256xf32> -> vector<8x256xf32>
    %cst_3 = arith.constant dense<0.000000e+00> : vector<256xf32>
    %3 = vector.multi_reduction <add>, %2, %cst_3 [0] : vector<8x256xf32> to vector<256xf32>
    %4 = vector.shape_cast %3 : vector<256xf32> to vector<1x256xf32>
    %5 = arith.mulf %2, %2 : vector<8x256xf32>
    %cst_4 = arith.constant dense<0.000000e+00> : vector<256xf32>
    %6 = vector.multi_reduction <add>, %5, %cst_4 [0] : vector<8x256xf32> to vector<256xf32>
    %7 = vector.shape_cast %6 : vector<256xf32> to vector<1x256xf32>
    %cst_5 = arith.constant 1.250000e-01 : f32
    %8 = vector.broadcast %cst_5 : f32 to vector<1x256xf32>
    %9 = arith.mulf %4, %8 : vector<1x256xf32>
    %cst_6 = arith.constant 1.250000e-01 : f32
    %10 = vector.broadcast %cst_6 : f32 to vector<1x256xf32>
    %11 = arith.mulf %7, %10 : vector<1x256xf32>
    %12 = arith.mulf %9, %9 : vector<1x256xf32>
    %13 = arith.subf %11, %12 : vector<1x256xf32>
    %cst_7 = arith.constant 0.000000e+00 : f32
    %14 = vector.broadcast %cst_7 : f32 to vector<1x256xf32>
    %15 = arith.maximumf %13, %14 : vector<1x256xf32>
    %c0_8 = arith.constant 0 : index
    %c0_9 = arith.constant 0 : index
    %16 = vector.load %arg2[%c0_8, %c0_9] : memref<1x256xf32, #tpu.memory_space<vmem>>, vector<1x256xf32>
    %cst_10 = arith.constant 9.99999974E-6 : f32
    %17 = vector.broadcast %cst_10 : f32 to vector<1x256xf32>
    %18 = arith.addf %15, %17 : vector<1x256xf32>
    %19 = math.rsqrt %18 : vector<1x256xf32>
    %20 = arith.mulf %16, %19 : vector<1x256xf32>
    %c0_11 = arith.constant 0 : index
    %c0_12 = arith.constant 0 : index
    %21 = vector.load %arg3[%c0_11, %c0_12] : memref<1x256xf32, #tpu.memory_space<vmem>>, vector<1x256xf32>
    %22 = arith.mulf %9, %20 : vector<1x256xf32>
    %23 = arith.subf %21, %22 : vector<1x256xf32>
    %24 = vector.broadcast %20 : vector<1x256xf32> to vector<8x256xf32>
    %25 = arith.mulf %2, %24 : vector<8x256xf32>
    %26 = vector.broadcast %23 : vector<1x256xf32> to vector<8x256xf32>
    %27 = arith.addf %25, %26 : vector<8x256xf32>
    %cst_13 = arith.constant 2.000000e-01 : f32
    %28 = vector.broadcast %cst_13 : f32 to vector<8x256xf32>
    %29 = arith.mulf %28, %27 : vector<8x256xf32>
    %30 = arith.maximumf %27, %29 : vector<8x256xf32>
    %c0_14 = arith.constant 0 : index
    %c0_15 = arith.constant 0 : index
    %31 = vector.load %arg4[%c0_14, %c0_15] : memref<256x256xf32, #tpu.memory_space<vmem>>, vector<256x256xf32>
    %cst_16 = arith.constant dense<0.000000e+00> : vector<8x256xf32>
    %32 = tpu.matmul %30, %31, %cst_16 {dimension_numbers = #tpu.dot_dimension_numbers<[1], [0], [0], [1], [0, 0, 1, 1], [], []>} : vector<8x256xf32>, vector<256x256xf32>, vector<8x256xf32> -> vector<8x256xf32>
    %cst_17 = arith.constant dense<0.000000e+00> : vector<256xf32>
    %33 = vector.multi_reduction <add>, %32, %cst_17 [0] : vector<8x256xf32> to vector<256xf32>
    %34 = vector.shape_cast %33 : vector<256xf32> to vector<1x256xf32>
    %35 = arith.mulf %32, %32 : vector<8x256xf32>
    %cst_18 = arith.constant dense<0.000000e+00> : vector<256xf32>
    %36 = vector.multi_reduction <add>, %35, %cst_18 [0] : vector<8x256xf32> to vector<256xf32>
    %37 = vector.shape_cast %36 : vector<256xf32> to vector<1x256xf32>
    %cst_19 = arith.constant 1.250000e-01 : f32
    %38 = vector.broadcast %cst_19 : f32 to vector<1x256xf32>
    %39 = arith.mulf %34, %38 : vector<1x256xf32>
    %cst_20 = arith.constant 1.250000e-01 : f32
    %40 = vector.broadcast %cst_20 : f32 to vector<1x256xf32>
    %41 = arith.mulf %37, %40 : vector<1x256xf32>
    %42 = arith.mulf %39, %39 : vector<1x256xf32>
    %43 = arith.subf %41, %42 : vector<1x256xf32>
    %cst_21 = arith.constant 0.000000e+00 : f32
    %44 = vector.broadcast %cst_21 : f32 to vector<1x256xf32>
    %45 = arith.maximumf %43, %44 : vector<1x256xf32>
    %c0_22 = arith.constant 0 : index
    %c0_23 = arith.constant 0 : index
    %46 = vector.load %arg5[%c0_22, %c0_23] : memref<1x256xf32, #tpu.memory_space<vmem>>, vector<1x256xf32>
    %cst_24 = arith.constant 9.99999974E-6 : f32
    %47 = vector.broadcast %cst_24 : f32 to vector<1x256xf32>
    %48 = arith.addf %45, %47 : vector<1x256xf32>
    %49 = math.rsqrt %48 : vector<1x256xf32>
    %50 = arith.mulf %46, %49 : vector<1x256xf32>
    %c0_25 = arith.constant 0 : index
    %c0_26 = arith.constant 0 : index
    %51 = vector.load %arg6[%c0_25, %c0_26] : memref<1x256xf32, #tpu.memory_space<vmem>>, vector<1x256xf32>
    %52 = arith.mulf %39, %50 : vector<1x256xf32>
    %53 = arith.subf %51, %52 : vector<1x256xf32>
    %54 = vector.broadcast %50 : vector<1x256xf32> to vector<8x256xf32>
    %55 = arith.mulf %32, %54 : vector<8x256xf32>
    %56 = vector.broadcast %53 : vector<1x256xf32> to vector<8x256xf32>
    %57 = arith.addf %55, %56 : vector<8x256xf32>
    %cst_27 = arith.constant 2.000000e-01 : f32
    %58 = vector.broadcast %cst_27 : f32 to vector<8x256xf32>
    %59 = arith.mulf %58, %57 : vector<8x256xf32>
    %60 = arith.maximumf %57, %59 : vector<8x256xf32>
    %c0_28 = arith.constant 0 : index
    %c0_29 = arith.constant 0 : index
    %61 = vector.load %arg7[%c0_28, %c0_29] : memref<256x128xf32, #tpu.memory_space<vmem>>, vector<256x128xf32>
    %cst_30 = arith.constant dense<0.000000e+00> : vector<8x128xf32>
    %62 = tpu.matmul %60, %61, %cst_30 {dimension_numbers = #tpu.dot_dimension_numbers<[1], [0], [0], [1], [0, 0, 1, 1], [], []>} : vector<8x256xf32>, vector<256x128xf32>, vector<8x128xf32> -> vector<8x128xf32>
    %c0_31 = arith.constant 0 : index
    %c0_32 = arith.constant 0 : index
    %63 = vector.load %arg8[%c0_31, %c0_32] : memref<1x128xf32, #tpu.memory_space<vmem>>, vector<1x128xf32>
    %64 = vector.broadcast %63 : vector<1x128xf32> to vector<8x128xf32>
    %65 = arith.addf %62, %64 : vector<8x128xf32>
    %c0_33 = arith.constant 0 : index
    %c0_34 = arith.constant 0 : index
    %66 = vector.load %arg9[%c0_33, %c0_34] : memref<8x128xf32, #tpu.memory_space<vmem>>, vector<8x128xf32>
    tpu.vector_store %arg9[%c0_33, %c0_34], %65 {strides = array<i32>} : memref<8x128xf32, #tpu.memory_space<vmem>>, vector<8x128xf32>,
    return
  }
}

</mosaic_0001>

<llo_original>
// kernel: tpu_custom_call.1
$region0: #{tpu_custom_call.1}
  #allocation0 [shape = 'u32[]', space=smem, size = 0x4, offset = 0x4, fixed_abs, tag = 'smem constant byte address 0x4 - core index']
  #allocation1 [shape = 'u32[144,128]{1,0:T(1,128)}', space=vmem, size = 0x12000, scoped, tag = 'internal scratch']
  %s0 = inlined_call_operand.hbm [shape: f32[8,32], index: 0, kind: input, shape index: {}]
  %s1 = inlined_call_operand.hbm [shape: f32[32,256], index: 1, kind: input, shape index: {}]
  %s2 = inlined_call_operand.vmem [shape: f32[1,256], index: 2, kind: input, shape index: {}]
  %s3 = inlined_call_operand.vmem [shape: f32[1,256], index: 3, kind: input, shape index: {}]
  %s4 = inlined_call_operand.hbm [shape: f32[256,256], index: 4, kind: input, shape index: {}]
  %s5 = inlined_call_operand.vmem [shape: f32[1,256], index: 5, kind: input, shape index: {}]
  %s6 = inlined_call_operand.vmem [shape: f32[1,256], index: 6, kind: input, shape index: {}]
  %s7 = inlined_call_operand.hbm [shape: f32[256,128], index: 7, kind: input, shape index: {}]
  %s8 = inlined_call_operand.vmem [shape: f32[1,128], index: 8, kind: input, shape index: {}]
  %s9 = inlined_call_operand.hbm [shape: f32[8,128], index: 9, kind: output, shape index: {}]
  %s10 = sld [smem:[#allocation0]]
  $region62: #{tpu_custom_call.1} parent=0
    _
  %s12 = ssub.s32 1, %s10
  %s13 = scalar_select 0, %s12, %s10
  $region1: #{tpu_custom_call.1} parent=0
    #allocation2 [shape = 'u8[4096]{0}', space=vmem, size = 0x1000, scoped, tag = 'input window, operand 0, single buffered']
    #allocation3 [shape = 's32[1]{0}', space=sflag, size = 0x4, scoped, tag = 'scoped memory for tpu_custom_call.1']
    #allocation4 [shape = 's32[1]{0}', space=sflag, size = 0x4, scoped, tag = 'scoped memory for tpu_custom_call.1']
    #allocation5 [shape = 'u8[32768]{0}', space=vmem, size = 0x8000, scoped, tag = 'input window, operand 1, single buffered']
    #allocation6 [shape = 's32[1]{0}', space=sflag, size = 0x4, scoped, tag = 'scoped memory for tpu_custom_call.1']
    #allocation7 [shape = 'u8[262144]{0}', space=vmem, size = 0x40000, scoped, tag = 'input window, operand 4, single buffered']
    #allocation8 [shape = 'u8[131072]{0}', space=vmem, size = 0x20000, scoped, tag = 'input window, operand 7, single buffered']
    #allocation9 [shape = 's32[1]{0}', space=sflag, size = 0x4, scoped, tag = 'scoped memory for tpu_custom_call.1']
    #allocation10 [shape = 'u8[4096]{0}', space=vmem, size = 0x1000, scoped, tag = 'output window, operand 0, single buffered']
    %14 = vsyncpa [#allocation3], 0
    %15 = vsyncpa [#allocation6], 0
    %16 = vsyncpa [#allocation9], 0
    %17 = vsyncpa [#allocation4], 0
    // Predicated region
    $region2: #{tpu_custom_call.1} parent=1 // pred_check
      _
    $region3: #{tpu_custom_call.1} parent=1 // pred_check_branch
      %19 = sbr.rel (0) target = $region5
    $region4: #{tpu_custom_call.1} parent=1 // pred_region
      %s21 = ssub.s32 128, 128
      %22 = vsyncadd [#allocation3], %s21
      %s24 = sshll.u32 [#allocation2], 4
      %s25 = int_to_ptr.vmem [resolvable:$true] %s24
      %27 = dma.hbm_to_vmem [thread:$0]  %s0, 128, %s25, [#allocation3]
    $region5: #{tpu_custom_call.1} parent=1 // pred_fallthru
      _
    // Predicated region
    $region6: #{tpu_custom_call.1} parent=1 // pred_check
      _
    $region7: #{tpu_custom_call.1} parent=1 // pred_check_branch
      %29 = sbr.rel (0) target = $region9
    $region8: #{tpu_custom_call.1} parent=1 // pred_region
      %s31 = ssub.s32 1024, 1024
      %32 = vsyncadd [#allocation6], %s31
      %s33 = sshll.u32 [#allocation5], 4
      %s34 = int_to_ptr.vmem [resolvable:$true] %s33
      %39 = dma.hbm_to_vmem [thread:$0]  %s1, 1024, %s34, [#allocation6], 256, 256, 16
    $region9: #{tpu_custom_call.1} parent=1 // pred_fallthru
      _
    // Predicated region
    $region10: #{tpu_custom_call.1} parent=1 // pred_check
      _
    $region11: #{tpu_custom_call.1} parent=1 // pred_check_branch
      %41 = sbr.rel (0) target = $region13
    $region12: #{tpu_custom_call.1} parent=1 // pred_region
      _
    $region13: #{tpu_custom_call.1} parent=1 // pred_fallthru
      _
    // Predicated region
    $region14: #{tpu_custom_call.1} parent=1 // pred_check
      _
    $region15: #{tpu_custom_call.1} parent=1 // pred_check_branch
      %43 = sbr.rel (0) target = $region17
    $region16: #{tpu_custom_call.1} parent=1 // pred_region
      _
    $region17: #{tpu_custom_call.1} parent=1 // pred_fallthru
      _
    // Predicated region
    $region18: #{tpu_custom_call.1} parent=1 // pred_check
      _
    $region19: #{tpu_custom_call.1} parent=1 // pred_check_branch
      %45 = sbr.rel (0) target = $region21
    $region20: #{tpu_custom_call.1} parent=1 // pred_region
      %s47 = ssub.s32 8192, 8192
      %48 = vsyncadd [#allocation6], %s47
      %s49 = sshll.u32 [#allocation7], 4
      %s50 = int_to_ptr.vmem [resolvable:$true] %s49
      %55 = dma.hbm_to_vmem [thread:$0]  %s4, 8192, %s50, [#allocation6], 256, 256, 16
    $region21: #{tpu_custom_call.1} parent=1 // pred_fallthru
      _
    // Predicated region
    $region22: #{tpu_custom_call.1} parent=1 // pred_check
      _
    $region23: #{tpu_custom_call.1} parent=1 // pred_check_branch
      %57 = sbr.rel (0) target = $region25
    $region24: #{tpu_custom_call.1} parent=1 // pred_region
      _
    $region25: #{tpu_custom_call.1} parent=1 // pred_fallthru
      _
    // Predicated region
    $region26: #{tpu_custom_call.1} parent=1 // pred_check
      _
    $region27: #{tpu_custom_call.1} parent=1 // pred_check_branch
      %59 = sbr.rel (0) target = $region29
    $region28: #{tpu_custom_call.1} parent=1 // pred_region
      _
    $region29: #{tpu_custom_call.1} parent=1 // pred_fallthru
      _
    // Predicated region
    $region30: #{tpu_custom_call.1} parent=1 // pred_check
      _
    $region31: #{tpu_custom_call.1} parent=1 // pred_check_branch
      %61 = sbr.rel (0) target = $region33
    $region32: #{tpu_custom_call.1} parent=1 // pred_region
      %s63 = ssub.s32 4096, 4096
      %64 = vsyncadd [#allocation9], %s63
      %s65 = sshll.u32 [#allocation8], 4
      %s66 = int_to_ptr.vmem [resolvable:$true] %s65
      %71 = dma.hbm_to_vmem [thread:$0]  %s7, 4096, %s66, [#allocation9], 128, 128, 8
    $region33: #{tpu_custom_call.1} parent=1 // pred_fallthru
      _
    // Predicated region
    $region34: #{tpu_custom_call.1} parent=1 // pred_check
      _
    $region35: #{tpu_custom_call.1} parent=1 // pred_check_branch
      %73 = sbr.rel (0) target = $region37
    $region36: #{tpu_custom_call.1} parent=1 // pred_region
      _
    $region37: #{tpu_custom_call.1} parent=1 // pred_fallthru
      _
    // Predicated region
    $region38: #{tpu_custom_call.1} parent=1 // pred_check
      _
    $region39: #{tpu_custom_call.1} parent=1 // pred_check_branch
      %75 = sbr.rel (0) target = $region41
    $region40: #{tpu_custom_call.1} parent=1 // pred_region
      %76 = dma.done [#allocation3], 128
    $region41: #{tpu_custom_call.1} parent=1 // pred_fallthru
      _
    // Predicated region
    $region42: #{tpu_custom_call.1} parent=1 // pred_check
      _
    $region43: #{tpu_custom_call.1} parent=1 // pred_check_branch
      %78 = sbr.rel (0) target = $region45
    $region44: #{tpu_custom_call.1} parent=1 // pred_region
      %79 = dma.done [#allocation6], 1024
    $region45: #{tpu_custom_call.1} parent=1 // pred_fallthru
      _
    // Predicated region
    $region46: #{tpu_custom_call.1} parent=1 // pred_check
      _
    $region47: #{tpu_custom_call.1} parent=1 // pred_check_branch
      %81 = sbr.rel (0) target = $region49
    $region48: #{tpu_custom_call.1} parent=1 // pred_region
      %82 = dma.done [#allocation6], 8192
    $region49: #{tpu_custom_call.1} parent=1 // pred_fallthru
      _
    // Predicated region
    $region50: #{tpu_custom_call.1} parent=1 // pred_check
      _
    $region51: #{tpu_custom_call.1} parent=1 // pred_check_branch
      %84 = sbr.rel (0) target = $region53
    $region52: #{tpu_custom_call.1} parent=1 // pred_region
      %85 = dma.done [#allocation9], 4096
    $region53: #{tpu_custom_call.1} parent=1 // pred_fallthru
      _
    %v86 = vld [vmem:[#allocation2] sm:$0xff]
    %v87 = vld [vmem:[#allocation5] sm:$0xff]
    %v88 = vld [vmem:[#allocation5 + $0x8] sm:$0xff]
    %v89 = vld [vmem:[#allocation5 + $0x10] sm:$0xff]
    %v90 = vld [vmem:[#allocation5 + $0x18] sm:$0xff]
    %v91 = vld [vmem:[#allocation5 + $0x20] sm:$0xff]
    %v92 = vld [vmem:[#allocation5 + $0x28] sm:$0xff]
    %v93 = vld [vmem:[#allocation5 + $0x30] sm:$0xff]
    %v94 = vld [vmem:[#allocation5 + $0x38] sm:$0xff]
    %vm95 = vcmask 261120
    %v97 = vsel %vm95, %v86, 0
    %99 = vmatprep.subr.mxu0 %v88
    %100 = vmatpush1.msra.mxu0 %v87
    %101 = vmatprep.subr.mxu0 %v90
    %102 = vmatpush1.msra.mxu0 %v89
    %103 = vmatprep.subr.mxu0 %v92
    %104 = vmatpush1.msra.mxu0 %v91
    %105 = vmatprep.subr.mxu0 %v94
    %106 = vmatpush1.msra.mxu0 %v93
    %107 = vmatprep.subr.mxu0 0.0
    %108 = vmatpush1.msra.mxu0 0.0
    %109 = vmatprep.subr.mxu0 0.0
    %110 = vmatpush1.msra.mxu0 0.0
    %111 = vmatprep.subr.mxu0 0.0
    %112 = vmatpush1.msra.mxu0 0.0
    %113 = vmatprep.subr.mxu0 0.0
    %114 = vmatpush1.msra.mxu0 0.0
    %115 = vmatprep.subr.mxu0 0.0
    %116 = vmatpush1.msra.mxu0 0.0
    %117 = vmatprep.subr.mxu0 0.0
    %118 = vmatpush1.msra.mxu0 0.0
    %119 = vmatprep.subr.mxu0 0.0
    %120 = vmatpush1.msra.mxu0 0.0
    %121 = vmatprep.subr.mxu0 0.0
    %122 = vmatpush1.msra.mxu0 0.0
    %123 = vmatprep.subr.mxu0 0.0
    %124 = vmatpush1.msra.mxu0 0.0
    %125 = vmatprep.subr.mxu0 0.0
    %126 = vmatpush1.msra.mxu0 0.0
    %127 = vmatprep.subr.mxu0 0.0
    %128 = vmatpush1.msra.mxu0 0.0
    %129 = vmatprep.subr.mxu0 0.0
    %130 = vmatpush1.msra.mxu0 0.0
    %131 = vmatprep.subr.mxu0 0.0
    %132 = vmatpush1.msra.mxu0 0.0
    %133 = vmatprep.subr.mxu0 0.0
    %134 = vmatpush1.msra.mxu0 0.0
    %135 = vmatprep.subr.mxu0 0.0
    %136 = vmatpush1.msra.mxu0 0.0
    %137 = vmatprep.subr.mxu0 0.0
    %138 = vmatpush1.msra.mxu0 0.0
    %139 = vmatprep.subr.mxu0 0.0
    %140 = vmatpush1.msra.mxu0 0.0
    %141 = vmatprep.subr.mxu0 0.0
    %142 = vmatpush1.msra.mxu0 0.0
    %143 = vmatprep.subr.mxu0 0.0
    %144 = vmatpush1.msra.mxu0 0.0
    %145 = vmatprep.subr.mxu0 0.0
    %146 = vmatpush1.msra.mxu0 0.0
    %147 = vmatprep.subr.mxu0 0.0
    %148 = vmatpush1.msra.mxu0 0.0
    %149 = vmatprep.subr.mxu0 0.0
    %150 = vmatpush1.msra.mxu0 0.0
    %151 = vmatprep.subr.mxu0 0.0
    %152 = vmatpush1.msra.mxu0 0.0
    %153 = vmatprep.subr.mxu0 0.0
    %154 = vmatpush1.msra.mxu0 0.0
    %155 = vmatprep.subr.mxu0 0.0
    %156 = vmatpush1.msra.mxu0 0.0
    %157 = vmatprep.subr.mxu0 0.0
    %158 = vmatpush1.msra.mxu0 0.0
    %159 = vmatprep.subr.mxu0 0.0
    %160 = vmatpush1.msra.mxu0 0.0
    %161 = vmatprep.subr.mxu0 0.0
    %162 = vmatpush1.msra.mxu0 0.0
    %163 = vmatprep.mubr.f32.mxu0 0.0
    %164 = vmatmul.mubr.f32.gmra.mrb[0].mxu0 %v97
    %v165 = vpop.f32.mrb[0].mxu0
    %v166 = vadd.f32 0.0, %v165
    %v167 = vpop.f32.mrb[0].mxu0
    %v168 = vadd.f32 0.0, %v167
    %169 = vdwg.mxu0
    %v170 = vrot.slane %v166, 4
    %v171 = vadd.f32 %v166, %v170
    %v172 = vrot.slane %v171, 2
    %v173 = vadd.f32 %v171, %v172
    %v174 = vrot.slane %v173, 1
    %v175 = vadd.f32 %v173, %v174
    %v176 = vrot.slane %v168, 4
    %v177 = vadd.f32 %v168, %v176
    %v178 = vrot.slane %v177, 2
    %v179 = vadd.f32 %v177, %v178
    %v180 = vrot.slane %v179, 1
    %v181 = vadd.f32 %v179, %v180
    %v182 = vmul.f32 %v166, %v166
    %v183 = vmul.f32 %v168, %v168
    %v184 = vrot.slane %v182, 4
    %v185 = vadd.f32 %v182, %v184
    %v186 = vrot.slane %v185, 2
    %v187 = vadd.f32 %v185, %v186
    %v188 = vrot.slane %v187, 1
    %v189 = vadd.f32 %v187, %v188
    %v190 = vrot.slane %v183, 4
    %v191 = vadd.f32 %v183, %v190
    %v192 = vrot.slane %v191, 2
    %v193 = vadd.f32 %v191, %v192
    %v194 = vrot.slane %v193, 1
    %v195 = vadd.f32 %v193, %v194
    %v196 = vmul.f32 %v175, 0.125
    %v197 = vmul.f32 %v181, 0.125
    %v198 = vmul.f32 %v189, 0.125
    %v199 = vmul.f32 %v195, 0.125
    %v200 = vmul.f32 %v196, %v196
    %v201 = vmul.f32 %v197, %v197
    %v202 = vsub.f32 %v198, %v200
    %v203 = vsub.f32 %v199, %v201
    %v204 = vmax.f32 %v202, 0.0
    %v205 = vmax.f32 %v203, 0.0
    %v206 = vld [vmem:[%s2] sm:$0x3]
    %v207 = vadd.f32 %v204, 1e-05
    %v208 = vadd.f32 %v205, 1e-05
    %v209 = vrsqrt.pop %v207
    %v210 = vrsqrt.pop %v208
    %v213 = vcombine.low %v209, %v210
    %v215 = vunpack.c.l.s4 1966171168
    %v216 = vunpack.c.0.s8 %v215
    %v217 = vlaneseq
    %v218 = vshrl.u32 %v217, 7
    %v219 = vsub.s32 %v216, %v218
    %v220 = vrot.slane %v213, %v219
    %v222 = vunpack.c.l.s4 1966171168
    %v223 = vunpack.c.0.s8 %v222
    %v224 = vlaneseq
    %v225 = vshrl.u32 %v224, 7
    %v226 = vsub.s32 %v223, %v225
    %v227 = vrot.slane %v220, %v226
    %v229 = vmul.f32 %v206, %v227
    %v230 = vld [vmem:[%s3] sm:$0x3]
    %v232 = vlaneseq
    %v233 = vshrl.u32 %v232, 7
    %v234 = vsub.s32 0, %v233
    %v235 = vrot.slane %v229, %v234
    %v236 = vlaneseq
    %v237 = vshrl.u32 %v236, 7
    %v238 = vsub.s32 1, %v237
    %v239 = vrot.slane %v229, %v238
    %v242 = vmul.f32 %v196, %v235
    %v243 = vmul.f32 %v197, %v239
    %v246 = vcombine.low %v242, %v243
    %v248 = vunpack.c.l.s4 1966171168
    %v249 = vunpack.c.0.s8 %v248
    %v250 = vlaneseq
    %v251 = vshrl.u32 %v250, 7
    %v252 = vsub.s32 %v249, %v251
    %v253 = vrot.slane %v246, %v252
    %v255 = vunpack.c.l.s4 1966171168
    %v256 = vunpack.c.0.s8 %v255
    %v257 = vlaneseq
    %v258 = vshrl.u32 %v257, 7
    %v259 = vsub.s32 %v256, %v258
    %v260 = vrot.slane %v253, %v259
    %v262 = vsub.f32 %v230, %v260
    %v263 = vmul.f32 %v166, %v235
    %v264 = vmul.f32 %v168, %v239
    %v266 = vlaneseq
    %v267 = vshrl.u32 %v266, 7
    %v268 = vsub.s32 0, %v267
    %v269 = vrot.slane %v262, %v268
    %v270 = vlaneseq
    %v271 = vshrl.u32 %v270, 7
    %v272 = vsub.s32 1, %v271
    %v273 = vrot.slane %v262, %v272
    %v276 = vadd.f32 %v263, %v269
    %v277 = vadd.f32 %v264, %v273
    %v278 = vmul.f32 %v276, 0.2
    %v279 = vmul.f32 %v277, 0.2
    %v280 = vmax.f32 %v276, %v278
    %v281 = vmax.f32 %v277, %v279
    %v282 = vld [vmem:[#allocation7] sm:$0xff]
    %v283 = vld [vmem:[#allocation7 + $0x8] sm:$0xff]
    %v284 = vld [vmem:[#allocation7 + $0x10] sm:$0xff]
    %v285 = vld [vmem:[#allocation7 + $0x18] sm:$0xff]
    %v286 = vld [vmem:[#allocation7 + $0x20] sm:$0xff]
    %v287 = vld [vmem:[#allocation7 + $0x28] sm:$0xff]
    %v288 = vld [vmem:[#allocation7 + $0x30] sm:$0xff]
    %v289 = vld [vmem:[#allocation7 + $0x38] sm:$0xff]
    %v290 = vld [vmem:[#allocation7 + $0x40] sm:$0xff]
    %v291 = vld [vmem:[#allocation7 + $0x48] sm:$0xff]
    %v292 = vld [vmem:[#allocation7 + $0x50] sm:$0xff]
    %v293 = vld [vmem:[#allocation7 + $0x58] sm:$0xff]
    %v294 = vld [vmem:[#allocation7 + $0x60] sm:$0xff]
    %v295 = vld [vmem:[#allocation7 + $0x68] sm:$0xff]
    %v296 = vld [vmem:[#allocation7 + $0x70] sm:$0xff]
    %v297 = vld [vmem:[#allocation7 + $0x78] sm:$0xff]
    %v298 = vld [vmem:[#allocation7 + $0x80] sm:$0xff]
    %v299 = vld [vmem:[#allocation7 + $0x88] sm:$0xff]
    %v300 = vld [vmem:[#allocation7 + $0x90] sm:$0xff]
    %v301 = vld [vmem:[#allocation7 + $0x98] sm:$0xff]
    %v302 = vld [vmem:[#allocation7 + $0xa0] sm:$0xff]
    %v303 = vld [vmem:[#allocation7 + $0xa8] sm:$0xff]
    %v304 = vld [vmem:[#allocation7 + $0xb0] sm:$0xff]
    %v305 = vld [vmem:[#allocation7 + $0xb8] sm:$0xff]
    %v306 = vld [vmem:[#allocation7 + $0xc0] sm:$0xff]
    %v307 = vld [vmem:[#allocation7 + $0xc8] sm:$0xff]
    %v308 = vld [vmem:[#allocation7 + $0xd0] sm:$0xff]
    %v309 = vld [vmem:[#allocation7 + $0xd8] sm:$0xff]
    %v310 = vld [vmem:[#allocation7 + $0xe0] sm:$0xff]
    %v311 = vld [vmem:[#allocation7 + $0xe8] sm:$0xff]
    %v312 = vld [vmem:[#allocation7 + $0xf0] sm:$0xff]
    %v313 = vld [vmem:[#allocation7 + $0xf8] sm:$0xff]
    %v314 = vld [vmem:[#allocation7 + $0x100] sm:$0xff]
    %v315 = vld [vmem:[#allocation7 + $0x108] sm:$0xff]
    %v316 = vld [vmem:[#allocation7 + $0x110] sm:$0xff]
    %v317 = vld [vmem:[#allocation7 + $0x118] sm:$0xff]
    %v318 = vld [vmem:[#allocation7 + $0x120] sm:$0xff]
    %v319 = vld [vmem:[#allocation7 + $0x128] sm:$0xff]
    %v320 = vld [vmem:[#allocation7 + $0x130] sm:$0xff]
    %v321 = vld [vmem:[#allocation7 + $0x138] sm:$0xff]
    %v322 = vld [vmem:[#allocation7 + $0x140] sm:$0xff]
    %v323 = vld [vmem:[#allocation7 + $0x148] sm:$0xff]
    %v324 = vld [vmem:[#allocation7 + $0x150] sm:$0xff]
    %v325 = vld [vmem:[#allocation7 + $0x158] sm:$0xff]
    %v326 = vld [vmem:[#allocation7 + $0x160] sm:$0xff]
    %v327 = vld [vmem:[#allocation7 + $0x168] sm:$0xff]
    %v328 = vld [vmem:[#allocation7 + $0x170] sm:$0xff]
    %v329 = vld [vmem:[#allocation7 + $0x178] sm:$0xff]
    %v330 = vld [vmem:[#allocation7 + $0x180] sm:$0xff]
    %v331 = vld [vmem:[#allocation7 + $0x188] sm:$0xff]
    %v332 = vld [vmem:[#allocation7 + $0x190] sm:$0xff]
    %v333 = vld [vmem:[#allocation7 + $0x198] sm:$0xff]
    %v334 = vld [vmem:[#allocation7 + $0x1a0] sm:$0xff]
    %v335 = vld [vmem:[#allocation7 + $0x1a8] sm:$0xff]
    %v336 = vld [vmem:[#allocation7 + $0x1b0] sm:$0xff]
    %v337 = vld [vmem:[#allocation7 + $0x1b8] sm:$0xff]
    %v338 = vld [vmem:[#allocation7 + $0x1c0] sm:$0xff]
    %v339 = vld [vmem:[#allocation7 + $0x1c8] sm:$0xff]
    %v340 = vld [vmem:[#allocation7 + $0x1d0] sm:$0xff]
    %v341 = vld [vmem:[#allocation7 + $0x1d8] sm:$0xff]
    %v342 = vld [vmem:[#allocation7 + $0x1e0] sm:$0xff]
    %v343 = vld [vmem:[#allocation7 + $0x1e8] sm:$0xff]
    %v344 = vld [vmem:[#allocation7 + $0x1f0] sm:$0xff]
    %v345 = vld [vmem:[#allocation7 + $0x1f8] sm:$0xff]
    %346 = vmatprep.subr.mxu0 %v283
    %347 = vmatpush1.msra.mxu0 %v282
    %348 = vmatprep.subr.mxu0 %v285
    %349 = vmatpush1.msra.mxu0 %v284
    %350 = vmatprep.subr.mxu0 %v287
    %351 = vmatpush1.msra.mxu0 %v286
    %352 = vmatprep.subr.mxu0 %v289
    %353 = vmatpush1.msra.mxu0 %v288
    %354 = vmatprep.subr.mxu0 %v291
    %355 = vmatpush1.msra.mxu0 %v290
    %356 = vmatprep.subr.mxu0 %v293
    %357 = vmatpush1.msra.mxu0 %v292
    %358 = vmatprep.subr.mxu0 %v295
    %359 = vmatpush1.msra.mxu0 %v294
    %360 = vmatprep.subr.mxu0 %v297
    %361 = vmatpush1.msra.mxu0 %v296
    %362 = vmatprep.subr.mxu0 %v299
    %363 = vmatpush1.msra.mxu0 %v298
    %364 = vmatprep.subr.mxu0 %v301
    %365 = vmatpush1.msra.mxu0 %v300
    %366 = vmatprep.subr.mxu0 %v303
    %367 = vmatpush1.msra.mxu0 %v302
    %368 = vmatprep.subr.mxu0 %v305
    %369 = vmatpush1.msra.mxu0 %v304
    %370 = vmatprep.subr.mxu0 %v307
    %371 = vmatpush1.msra.mxu0 %v306
    %372 = vmatprep.subr.mxu0 %v309
    %373 = vmatpush1.msra.mxu0 %v308
    %374 = vmatprep.subr.mxu0 %v311
    %375 = vmatpush1.msra.mxu0 %v310
    %376 = vmatprep.subr.mxu0 %v313
    %377 = vmatpush1.msra.mxu0 %v312
    %378 = vmatprep.subr.mxu0 %v315
    %379 = vmatpush1.msra.mxu0 %v314
    %380 = vmatprep.subr.mxu0 %v317
    %381 = vmatpush1.msra.mxu0 %v316
    %382 = vmatprep.subr.mxu0 %v319
    %383 = vmatpush1.msra.mxu0 %v318
    %384 = vmatprep.subr.mxu0 %v321
    %385 = vmatpush1.msra.mxu0 %v320
    %386 = vmatprep.subr.mxu0 %v323
    %387 = vmatpush1.msra.mxu0 %v322
    %388 = vmatprep.subr.mxu0 %v325
    %389 = vmatpush1.msra.mxu0 %v324
    %390 = vmatprep.subr.mxu0 %v327
    %391 = vmatpush1.msra.mxu0 %v326
    %392 = vmatprep.subr.mxu0 %v329
    %393 = vmatpush1.msra.mxu0 %v328
    %394 = vmatprep.subr.mxu0 %v331
    %395 = vmatpush1.msra.mxu0 %v330
    %396 = vmatprep.subr.mxu0 %v333
    %397 = vmatpush1.msra.mxu0 %v332
    %398 = vmatprep.subr.mxu0 %v335
    %399 = vmatpush1.msra.mxu0 %v334
    %400 = vmatprep.subr.mxu0 %v337
    %401 = vmatpush1.msra.mxu0 %v336
    %402 = vmatprep.subr.mxu0 %v339
    %403 = vmatpush1.msra.mxu0 %v338
    %404 = vmatprep.subr.mxu0 %v341
    %405 = vmatpush1.msra.mxu0 %v340
    %406 = vmatprep.subr.mxu0 %v343
    %407 = vmatpush1.msra.mxu0 %v342
    %408 = vmatprep.subr.mxu0 %v345
    %409 = vmatpush1.msra.mxu0 %v344
    %410 = vmatprep.mubr.f32.mxu0 %v281
    %411 = vmatmul.mubr.f32.gmra.mrb[0].mxu0 %v280
    %v412 = vpop.f32.mrb[0].mxu0
    %v413 = vadd.f32 0.0, %v412
    %v414 = vpop.f32.mrb[0].mxu0
    %v415 = vadd.f32 0.0, %v414
    %416 = vdwg.mxu0
    %v417 = vrot.slane %v413, 4
    %v418 = vadd.f32 %v413, %v417
    %v419 = vrot.slane %v418, 2
    %v420 = vadd.f32 %v418, %v419
    %v421 = vrot.slane %v420, 1
    %v422 = vadd.f32 %v420, %v421
    %v423 = vrot.slane %v415, 4
    %v424 = vadd.f32 %v415, %v423
    %v425 = vrot.slane %v424, 2
    %v426 = vadd.f32 %v424, %v425
    %v427 = vrot.slane %v426, 1
    %v428 = vadd.f32 %v426, %v427
    %v429 = vmul.f32 %v413, %v413
    %v430 = vmul.f32 %v415, %v415
    %v431 = vrot.slane %v429, 4
    %v432 = vadd.f32 %v429, %v431
    %v433 = vrot.slane %v432, 2
    %v434 = vadd.f32 %v432, %v433
    %v435 = vrot.slane %v434, 1
    %v436 = vadd.f32 %v434, %v435
    %v437 = vrot.slane %v430, 4
    %v438 = vadd.f32 %v430, %v437
    %v439 = vrot.slane %v438, 2
    %v440 = vadd.f32 %v438, %v439
    %v441 = vrot.slane %v440, 1
    %v442 = vadd.f32 %v440, %v441
    %v443 = vmul.f32 %v422, 0.125
    %v444 = vmul.f32 %v428, 0.125
    %v445 = vmul.f32 %v436, 0.125
    %v446 = vmul.f32 %v442, 0.125
    %v447 = vmul.f32 %v443, %v443
    %v448 = vmul.f32 %v444, %v444
    %v449 = vsub.f32 %v445, %v447
    %v450 = vsub.f32 %v446, %v448
    %v451 = vmax.f32 %v449, 0.0
    %v452 = vmax.f32 %v450, 0.0
    %v453 = vld [vmem:[%s5] sm:$0x3]
    %v454 = vadd.f32 %v451, 1e-05
    %v455 = vadd.f32 %v452, 1e-05
    %v456 = vrsqrt.pop %v454
    %v457 = vrsqrt.pop %v455
    %v460 = vcombine.low %v456, %v457
    %v462 = vunpack.c.l.s4 1966171168
    %v463 = vunpack.c.0.s8 %v462
    %v464 = vlaneseq
    %v465 = vshrl.u32 %v464, 7
    %v466 = vsub.s32 %v463, %v465
    %v467 = vrot.slane %v460, %v466
    %v469 = vunpack.c.l.s4 1966171168
    %v470 = vunpack.c.0.s8 %v469
    %v471 = vlaneseq
    %v472 = vshrl.u32 %v471, 7
    %v473 = vsub.s32 %v470, %v472
    %v474 = vrot.slane %v467, %v473
    %v476 = vmul.f32 %v453, %v474
    %v477 = vld [vmem:[%s6] sm:$0x3]
    %v479 = vlaneseq
    %v480 = vshrl.u32 %v479, 7
    %v481 = vsub.s32 0, %v480
    %v482 = vrot.slane %v476, %v481
    %v483 = vlaneseq
    %v484 = vshrl.u32 %v483, 7
    %v485 = vsub.s32 1, %v484
    %v486 = vrot.slane %v476, %v485
    %v489 = vmul.f32 %v443, %v482
    %v490 = vmul.f32 %v444, %v486
    %v493 = vcombine.low %v489, %v490
    %v495 = vunpack.c.l.s4 1966171168
    %v496 = vunpack.c.0.s8 %v495
    %v497 = vlaneseq
    %v498 = vshrl.u32 %v497, 7
    %v499 = vsub.s32 %v496, %v498
    %v500 = vrot.slane %v493, %v499
    %v502 = vunpack.c.l.s4 1966171168
    %v503 = vunpack.c.0.s8 %v502
    %v504 = vlaneseq
    %v505 = vshrl.u32 %v504, 7
    %v506 = vsub.s32 %v503, %v505
    %v507 = vrot.slane %v500, %v506
    %v509 = vsub.f32 %v477, %v507
    %v510 = vmul.f32 %v413, %v482
    %v511 = vmul.f32 %v415, %v486
    %v513 = vlaneseq
    %v514 = vshrl.u32 %v513, 7
    %v515 = vsub.s32 0, %v514
    %v516 = vrot.slane %v509, %v515
    %v517 = vlaneseq
    %v518 = vshrl.u32 %v517, 7
    %v519 = vsub.s32 1, %v518
    %v520 = vrot.slane %v509, %v519
    %v523 = vadd.f32 %v510, %v516
    %v524 = vadd.f32 %v511, %v520
    %v525 = vmul.f32 %v523, 0.2
    %v526 = vmul.f32 %v524, 0.2
    %v527 = vmax.f32 %v523, %v525
    %v528 = vmax.f32 %v524, %v526
    %v529 = vld [vmem:[#allocation8] sm:$0xff]
    %v530 = vld [vmem:[#allocation8 + $0x8] sm:$0xff]
    %v531 = vld [vmem:[#allocation8 + $0x10] sm:$0xff]
    %v532 = vld [vmem:[#allocation8 + $0x18] sm:$0xff]
    %v533 = vld [vmem:[#allocation8 + $0x20] sm:$0xff]
    %v534 = vld [vmem:[#allocation8 + $0x28] sm:$0xff]
    %v535 = vld [vmem:[#allocation8 + $0x30] sm:$0xff]
    %v536 = vld [vmem:[#allocation8 + $0x38] sm:$0xff]
    %v537 = vld [vmem:[#allocation8 + $0x40] sm:$0xff]
    %v538 = vld [vmem:[#allocation8 + $0x48] sm:$0xff]
    %v539 = vld [vmem:[#allocation8 + $0x50] sm:$0xff]
    %v540 = vld [vmem:[#allocation8 + $0x58] sm:$0xff]
    %v541 = vld [vmem:[#allocation8 + $0x60] sm:$0xff]
    %v542 = vld [vmem:[#allocation8 + $0x68] sm:$0xff]
    %v543 = vld [vmem:[#allocation8 + $0x70] sm:$0xff]
    %v544 = vld [vmem:[#allocation8 + $0x78] sm:$0xff]
    %v545 = vld [vmem:[#allocation8 + $0x80] sm:$0xff]
    %v546 = vld [vmem:[#allocation8 + $0x88] sm:$0xff]
    %v547 = vld [vmem:[#allocation8 + $0x90] sm:$0xff]
    %v548 = vld [vmem:[#allocation8 + $0x98] sm:$0xff]
    %v549 = vld [vmem:[#allocation8 + $0xa0] sm:$0xff]
    %v550 = vld [vmem:[#allocation8 + $0xa8] sm:$0xff]
    %v551 = vld [vmem:[#allocation8 + $0xb0] sm:$0xff]
    %v552 = vld [vmem:[#allocation8 + $0xb8] sm:$0xff]
    %v553 = vld [vmem:[#allocation8 + $0xc0] sm:$0xff]
    %v554 = vld [vmem:[#allocation8 + $0xc8] sm:$0xff]
    %v555 = vld [vmem:[#allocation8 + $0xd0] sm:$0xff]
    %v556 = vld [vmem:[#allocation8 + $0xd8] sm:$0xff]
    %v557 = vld [vmem:[#allocation8 + $0xe0] sm:$0xff]
    %v558 = vld [vmem:[#allocation8 + $0xe8] sm:$0xff]
    %v559 = vld [vmem:[#allocation8 + $0xf0] sm:$0xff]
    %v560 = vld [vmem:[#allocation8 + $0xf8] sm:$0xff]
    %v561 = vld [vmem:[%s8] sm:$0x1]
    %v563 = vlaneseq
    %v564 = vshrl.u32 %v563, 7
    %v565 = vsub.s32 0, %v564
    %v566 = vrot.slane %v561, %v565
    %568 = vmatprep.subr.mxu0 0.0
    %569 = vmatpush1.msra.mxu0 %v529
    %570 = vmatprep.subr.mxu0 0.0
    %571 = vmatpush1.msra.mxu0 %v530
    %572 = vmatprep.subr.mxu0 0.0
    %573 = vmatpush1.msra.mxu0 %v531
    %574 = vmatprep.subr.mxu0 0.0
    %575 = vmatpush1.msra.mxu0 %v532
    %576 = vmatprep.subr.mxu0 0.0
    %577 = vmatpush1.msra.mxu0 %v533
    %578 = vmatprep.subr.mxu0 0.0
    %579 = vmatpush1.msra.mxu0 %v534
    %580 = vmatprep.subr.mxu0 0.0
    %581 = vmatpush1.msra.mxu0 %v535
    %582 = vmatprep.subr.mxu0 0.0
    %583 = vmatpush1.msra.mxu0 %v536
    %584 = vmatprep.subr.mxu0 0.0
    %585 = vmatpush1.msra.mxu0 %v537
    %586 = vmatprep.subr.mxu0 0.0
    %587 = vmatpush1.msra.mxu0 %v538
    %588 = vmatprep.subr.mxu0 0.0
    %589 = vmatpush1.msra.mxu0 %v539
    %590 = vmatprep.subr.mxu0 0.0
    %591 = vmatpush1.msra.mxu0 %v540
    %592 = vmatprep.subr.mxu0 0.0
    %593 = vmatpush1.msra.mxu0 %v541
    %594 = vmatprep.subr.mxu0 0.0
    %595 = vmatpush1.msra.mxu0 %v542
    %596 = vmatprep.subr.mxu0 0.0
    %597 = vmatpush1.msra.mxu0 %v543
    %598 = vmatprep.subr.mxu0 0.0
    %599 = vmatpush1.msra.mxu0 %v544
    %600 = vmatprep.subr.mxu0 0.0
    %601 = vmatpush1.msra.mxu0 %v545
    %602 = vmatprep.subr.mxu0 0.0
    %603 = vmatpush1.msra.mxu0 %v546
    %604 = vmatprep.subr.mxu0 0.0
    %605 = vmatpush1.msra.mxu0 %v547
    %606 = vmatprep.subr.mxu0 0.0
    %607 = vmatpush1.msra.mxu0 %v548
    %608 = vmatprep.subr.mxu0 0.0
    %609 = vmatpush1.msra.mxu0 %v549
    %610 = vmatprep.subr.mxu0 0.0
    %611 = vmatpush1.msra.mxu0 %v550
    %612 = vmatprep.subr.mxu0 0.0
    %613 = vmatpush1.msra.mxu0 %v551
    %614 = vmatprep.subr.mxu0 0.0
    %615 = vmatpush1.msra.mxu0 %v552
    %616 = vmatprep.subr.mxu0 0.0
    %617 = vmatpush1.msra.mxu0 %v553
    %618 = vmatprep.subr.mxu0 0.0
    %619 = vmatpush1.msra.mxu0 %v554
    %620 = vmatprep.subr.mxu0 0.0
    %621 = vmatpush1.msra.mxu0 %v555
    %622 = vmatprep.subr.mxu0 0.0
    %623 = vmatpush1.msra.mxu0 %v556
    %624 = vmatprep.subr.mxu0 0.0
    %625 = vmatpush1.msra.mxu0 %v557
    %626 = vmatprep.subr.mxu0 0.0
    %627 = vmatpush1.msra.mxu0 %v558
    %628 = vmatprep.subr.mxu0 0.0
    %629 = vmatpush1.msra.mxu0 %v559
    %630 = vmatprep.subr.mxu0 0.0
    %631 = vmatpush1.msra.mxu0 %v560
    %632 = vmatprep.mubr.f32.mxu0 %v528
    %633 = vmatmul.mubr.f32.gmra.mrb[0].mxu0 %v527
    %v634 = vpop.f32.mrb[0].mxu0
    %v635 = vadd.f32 %v566, %v634
    %v636 = vpop.f32.mrb[0].mxu0
    %637 = vdwg.mxu0
    %638 = vst [vmem:[#allocation10] sm:$0xff] %v635
    // Predicated region
    $region54: #{tpu_custom_call.1} parent=1 // pred_check
      _
    $region55: #{tpu_custom_call.1} parent=1 // pred_check_branch
      %640 = sbr.rel (0) target = $region57
    $region56: #{tpu_custom_call.1} parent=1 // pred_region
      %s642 = ssub.s32 128, 128
      %643 = vsyncadd [#allocation4], %s642
      %s645 = sshll.u32 [#allocation10], 4
      %s646 = int_to_ptr.vmem [resolvable:$true] %s645
      %648 = dma.vmem_to_hbm [thread:$0]  %s646, 128, %s9, [#allocation4]
    $region57: #{tpu_custom_call.1} parent=1 // pred_fallthru
      _
    // Predicated region
    $region58: #{tpu_custom_call.1} parent=1 // pred_check
      _
    $region59: #{tpu_custom_call.1} parent=1 // pred_check_branch
      %650 = sbr.rel (0) target = $region61
    $region60: #{tpu_custom_call.1} parent=1 // pred_region
      %651 = dma.done [#allocation4], 128
    $region61: #{tpu_custom_call.1} parent=1 // pred_fallthru
      _
    %652 = vsyncpa [#allocation3], 1
    %653 = vsyncpa [#allocation6], 1
    %654 = vsyncpa [#allocation9], 1
    %655 = vsyncpa [#allocation4], 1

</llo_original>
